<compile_context>
chip_gen: v5e
topology: v5e:2x2
jax: 0.10.0
libtpu: 0.0.40
codegen_flags: <defaults>
</compile_context>

<pallas_src>
import functools
from collections import OrderedDict

import jax
import jax.numpy as jnp
from jax.experimental import pallas as pl
from jax.experimental.pallas import tpu as pltpu

EPS = 1e-8


def _infonce_kernel(v1_ref, v2full_ref, v2diag_ref, out_ref,
                    colsum_ref, rowacc_ref, dacc_ref, *, tao, batch):
    i = pl.program_id(0)
    inv_tao = 1.0 / tao
    # Constant log-sum-exp shift: cosine similarity is bounded, |s| <= 1/tao, so
    # exp(s - shift) is in (0, 1].
    # TODO(synk): for very small temperatures (tao < ~0.025) switch back to per-row /
    # per-column max stabilization (rank-1 correction) to avoid f32 exp underflow.
    shift = inv_tao

    @pl.when(i == 0)
    def _init():
        colsum_ref[...] = jnp.zeros_like(colsum_ref)
        rowacc_ref[...] = jnp.zeros_like(rowacc_ref)
        dacc_ref[...] = jnp.zeros_like(dacc_ref)

    v1 = v1_ref[...].astype(jnp.float32)        # (TB, D)  row tile of view1
    v2 = v2full_ref[...].astype(jnp.float32)    # (B,  D)  all of view2 (resident block)
    v2d = v2diag_ref[...].astype(jnp.float32)   # (TB, D)  matching rows of view2 (for the diagonal)

    # rsqrt-based normalization (== divide by max(||v||, eps)); fold 1/tao into the row
    # operand so the (TB,B) score matrix never needs a separate scaling pass.
    inv1 = jax.lax.rsqrt(jnp.maximum(jnp.sum(v1 * v1, axis=-1, keepdims=True), EPS * EPS))
    inv2 = jax.lax.rsqrt(jnp.maximum(jnp.sum(v2 * v2, axis=-1, keepdims=True), EPS * EPS))
    invd = jax.lax.rsqrt(jnp.maximum(jnp.sum(v2d * v2d, axis=-1, keepdims=True), EPS * EPS))
    v1s = v1 * (inv1 * inv_tao)                 # (TB, D)  already carries 1/tao
    v2n = v2 * inv2                             # (B,  D)
    v2dn = v2d * invd                           # (TB, D)

    # MXU matmul: contract both operands on the lane (D) axis -- no explicit transpose.
    # TODO(synk): if upstream can supply bf16 embeddings, feed bf16 operands here
    # (keep preferred_element_type=f32) for full MXU rate on v6e/v7x.
    s = jax.lax.dot_general(
        v1s, v2n,
        dimension_numbers=(((1,), (1,)), ((), ())),
        preferred_element_type=jnp.float32)     # (TB, B), already divided by tao

    # Diagonal of this row tile as a row-wise dot (no BxB eye mask).
    diag = jnp.sum(v1s * v2dn, axis=-1, keepdims=True)        # (TB, 1)

    # Single exp pass reused by both softmax directions.
    e = jnp.exp(s - shift)                                     # (TB, B)
    lse_row = jnp.log(jnp.sum(e, axis=1, keepdims=True)) + shift   # (TB, 1)

    rowacc_ref[...] += lse_row
    dacc_ref[...] += diag
    colsum_ref[...] += jnp.sum(e, axis=0, keepdims=True)       # (1, B)

    @pl.when(i == pl.num_programs(0) - 1)
    def _finalize():
        lse_col = jnp.log(colsum_ref[...]) + shift             # (1, B)
        diag_sum = jnp.sum(dacc_ref[...])
        loss12 = (jnp.sum(rowacc_ref[...]) - diag_sum) / batch
        loss21 = (jnp.sum(lse_col) - diag_sum) / batch
        out_ref[0, 0] = loss12 + loss21
        out_ref[0, 1] = loss12
        out_ref[0, 2] = loss21


def _pick_row_tile(b):
    """Row-tile size: monolithic for small B, 512-row tiles (or the largest divisor) above."""
    if b <= 1024:
        return b
    for t in (512, 256, 128, 64, 32, 16, 8):
        if b % t == 0:
            return t
    return b


def _vmem_estimate_bytes(b, d, tb):
    f = 4  # f32
    blocks = 2 * 2 * (tb * d) + 2 * (b * d)                    # double-buffered tiles + resident v2
    scratch = 8 * max(b, 128) + 2 * tb * 128                   # colsum + two (TB,1) accumulators (padded)
    temps = 3 * tb * b + 2 * b * d + 3 * tb * d                # s, e, column partials, normalized copies
    return f * (blocks + scratch + temps)


def infonce_loss(view1, view2, *, temperature=1.0):
    """InfoNCE forward (cosine sim, no masked margin). Returns (loss, aux_losses)."""
    assert view1.shape == view2.shape and view1.ndim == 2
    assert temperature > 0.0
    B, D = view1.shape
    tb = _pick_row_tile(B)
    n_tiles = B // tb

    kernel = functools.partial(_infonce_kernel, tao=float(temperature), batch=float(B))

    grid_spec = pltpu.PrefetchScalarGridSpec(
        num_scalar_prefetch=0,
        grid=(n_tiles,),
        in_specs=[
            pl.BlockSpec((tb, D), lambda i: (i, 0)),   # view1 row tile
            pl.BlockSpec((B, D), lambda i: (0, 0)),    # full view2 (resident across tiles)
            pl.BlockSpec((tb, D), lambda i: (i, 0)),   # matching view2 rows (diagonal)
        ],
        out_specs=pl.BlockSpec((1, 3), lambda i: (0, 0),
                               memory_space=pltpu.MemorySpace.SMEM),
        scratch_shapes=[
            pltpu.VMEM((1, B), jnp.float32),    # column exp-sums (2->1 direction)
            pltpu.VMEM((tb, 1), jnp.float32),   # running sum of row log-sum-exps
            pltpu.VMEM((tb, 1), jnp.float32),   # running sum of diagonal scores
        ],
    )

    # NOTE: capped at 64 MiB so it is valid on v7x as well; raise toward 128 MiB on
    # v5e/v6e for very large B*D.
    vmem_limit = int(min(max(2 * _vmem_estimate_bytes(B, D, tb), 32 * 1024 * 1024),
                         64 * 1024 * 1024))

    cost = pl.CostEstimate(
        flops=2 * B * B * D + 6 * B * D + 4 * B * B,
        transcendentals=B * B + 4 * B,
        bytes_accessed=3 * B * D * 4 + 12,
    )

    out = pl.pallas_call(
        kernel,
        out_shape=jax.ShapeDtypeStruct((1, 3), jnp.float32),
        grid_spec=grid_spec,
        compiler_params=pltpu.CompilerParams(
            dimension_semantics=("arbitrary",),   # row-tile axis carries accumulators
            vmem_limit_bytes=vmem_limit,
        ),
        cost_estimate=cost,
    )(view1, view2, view2)

    aux = OrderedDict()
    aux["1->2"] = out[0, 1]
    aux["2->1"] = out[0, 2]
    return out[0, 0], aux


def _reference(view1, view2, temperature=1.0):
    """Pure-JAX reference mirroring the PyTorch forward."""
    n1 = jnp.maximum(jnp.linalg.norm(view1, axis=-1, keepdims=True), EPS)
    n2 = jnp.maximum(jnp.linalg.norm(view2, axis=-1, keepdims=True), EPS)
    s = (view1 / n1) @ (view2 / n2).T / temperature
    lsm_row = -jax.nn.log_softmax(s, axis=-1)
    loss1 = jnp.mean(jnp.diag(lsm_row))
    lsm_col = -jax.nn.log_softmax(s.T, axis=-1)
    loss2 = jnp.mean(jnp.diag(lsm_col))
    return loss1 + loss2


if __name__ == "__main__":
    # Small shapes consistent with forward(): view1, view2 of shape [batch, embed_size]
    B, D = 8, 32
    key = jax.random.PRNGKey(0)
    k1, k2 = jax.random.split(key)
    view1 = jax.random.normal(k1, (B, D), dtype=jnp.float32)
    view2 = jax.random.normal(k2, (B, D), dtype=jnp.float32)

    loss, aux = infonce_loss(view1, view2, temperature=1.0)
    loss = jax.block_until_ready(loss)

    ref = _reference(view1, view2, 1.0)
    assert jnp.allclose(loss, ref, atol=1e-5, rtol=1e-5), (loss, ref)
    assert jnp.allclose(aux["1->2"] + aux["2->1"], loss, atol=1e-6)
    # TODO(synk): 'bilinear_approx' similarity, masked_margin / scheduler / adaptive-margin
    # branches are not exercised by the default config; only the cosine path is implemented.
    print("KERNEL_OK")
</pallas_src>

<mosaic_0001>
module attributes {stable_mosaic.version = 11 : i64} {
  func.func @_infonce_kernel(%arg0: i32, %arg1: memref<8x32xf32, #tpu.memory_space<vmem>>, %arg2: memref<8x32xf32, #tpu.memory_space<vmem>>, %arg3: memref<8x32xf32, #tpu.memory_space<vmem>>, %arg4: memref<1x3xf32, #tpu.memory_space<smem>>, %arg5: memref<1x8xf32, #tpu.memory_space<vmem>>, %arg6: memref<8x1xf32, #tpu.memory_space<vmem>>, %arg7: memref<8x1xf32, #tpu.memory_space<vmem>>) attributes {dimension_semantics = [#tpu.dimension_semantics<arbitrary>], iteration_bounds = array<i64: 1>, scalar_prefetch = 0 : i64, scratch_operands = 3 : i64, tpu.core_type = #tpu.core_type<tc>, window_params = [{transform_indices = @transform_0, window_bounds = array<i64: 8, 32>}, {pipeline_mode = #tpu.pipeline_mode<synchronous>, transform_indices = @transform_1, window_bounds = array<i64: 8, 32>}, {transform_indices = @transform_2, window_bounds = array<i64: 8, 32>}, {transform_indices = @transform_3, window_bounds = array<i64: 1, 3>}]} {
    %c0_i32 = arith.constant 0 : i32
    %0 = arith.cmpi eq, %arg0, %c0_i32 : i32
    %1 = arith.extui %0 : i1 to i32
    %c0_i32_0 = arith.constant 0 : i32
    %2 = arith.cmpi ne, %1, %c0_i32_0 : i32
    scf.if %2 {
      %cst_32 = arith.constant 0.000000e+00 : f32
      %58 = vector.broadcast %cst_32 : f32 to vector<1x8xf32>
      %c0_33 = arith.constant 0 : index
      %c0_34 = arith.constant 0 : index
      %59 = vector.load %arg5[%c0_33, %c0_34] : memref<1x8xf32, #tpu.memory_space<vmem>>, vector<1x8xf32>
      tpu.vector_store %arg5[%c0_33, %c0_34], %58 {strides = array<i32>} : memref<1x8xf32, #tpu.memory_space<vmem>>, vector<1x8xf32>,
      %cst_35 = arith.constant 0.000000e+00 : f32
      %60 = vector.broadcast %cst_35 : f32 to vector<8x1xf32>
      %c0_36 = arith.constant 0 : index
      %c0_37 = arith.constant 0 : index
      %61 = vector.load %arg6[%c0_36, %c0_37] : memref<8x1xf32, #tpu.memory_space<vmem>>, vector<8x1xf32>
      tpu.vector_store %arg6[%c0_36, %c0_37], %60 {strides = array<i32>} : memref<8x1xf32, #tpu.memory_space<vmem>>, vector<8x1xf32>,
      %cst_38 = arith.constant 0.000000e+00 : f32
      %62 = vector.broadcast %cst_38 : f32 to vector<8x1xf32>
      %c0_39 = arith.constant 0 : index
      %c0_40 = arith.constant 0 : index
      %63 = vector.load %arg7[%c0_39, %c0_40] : memref<8x1xf32, #tpu.memory_space<vmem>>, vector<8x1xf32>
      tpu.vector_store %arg7[%c0_39, %c0_40], %62 {strides = array<i32>} : memref<8x1xf32, #tpu.memory_space<vmem>>, vector<8x1xf32>,
    } else {
    }
    %c0 = arith.constant 0 : index
    %c0_1 = arith.constant 0 : index
    %3 = vector.load %arg1[%c0, %c0_1] : memref<8x32xf32, #tpu.memory_space<vmem>>, vector<8x32xf32>
    %c0_2 = arith.constant 0 : index
    %c0_3 = arith.constant 0 : index
    %4 = vector.load %arg2[%c0_2, %c0_3] : memref<8x32xf32, #tpu.memory_space<vmem>>, vector<8x32xf32>
    %c0_4 = arith.constant 0 : index
    %c0_5 = arith.constant 0 : index
    %5 = vector.load %arg3[%c0_4, %c0_5] : memref<8x32xf32, #tpu.memory_space<vmem>>, vector<8x32xf32>
    %6 = arith.mulf %3, %3 : vector<8x32xf32>
    %cst = arith.constant dense<0.000000e+00> : vector<8xf32>
    %7 = vector.multi_reduction <add>, %6, %cst [1] : vector<8x32xf32> to vector<8xf32>
    %8 = vector.shape_cast %7 : vector<8xf32> to vector<8x1xf32>
    %cst_6 = arith.constant 1.000000e-16 : f32
    %9 = vector.broadcast %cst_6 : f32 to vector<8x1xf32>
    %10 = arith.maximumf %8, %9 : vector<8x1xf32>
    %11 = math.rsqrt %10 : vector<8x1xf32>
    %12 = arith.mulf %4, %4 : vector<8x32xf32>
    %cst_7 = arith.constant dense<0.000000e+00> : vector<8xf32>
    %13 = vector.multi_reduction <add>, %12, %cst_7 [1] : vector<8x32xf32> to vector<8xf32>
    %14 = vector.shape_cast %13 : vector<8xf32> to vector<8x1xf32>
    %cst_8 = arith.constant 1.000000e-16 : f32
    %15 = vector.broadcast %cst_8 : f32 to vector<8x1xf32>
    %16 = arith.maximumf %14, %15 : vector<8x1xf32>
    %17 = math.rsqrt %16 : vector<8x1xf32>
    %18 = arith.mulf %5, %5 : vector<8x32xf32>
    %cst_9 = arith.constant dense<0.000000e+00> : vector<8xf32>
    %19 = vector.multi_reduction <add>, %18, %cst_9 [1] : vector<8x32xf32> to vector<8xf32>
    %20 = vector.shape_cast %19 : vector<8xf32> to vector<8x1xf32>
    %cst_10 = arith.constant 1.000000e-16 : f32
    %21 = vector.broadcast %cst_10 : f32 to vector<8x1xf32>
    %22 = arith.maximumf %20, %21 : vector<8x1xf32>
    %23 = math.rsqrt %22 : vector<8x1xf32>
    %cst_11 = arith.constant 1.000000e+00 : f32
    %24 = vector.broadcast %cst_11 : f32 to vector<8x1xf32>
    %25 = arith.mulf %11, %24 : vector<8x1xf32>
    %26 = vector.broadcast %25 : vector<8x1xf32> to vector<8x32xf32>
    %27 = arith.mulf %3, %26 : vector<8x32xf32>
    %28 = vector.broadcast %17 : vector<8x1xf32> to vector<8x32xf32>
    %29 = arith.mulf %4, %28 : vector<8x32xf32>
    %30 = vector.broadcast %23 : vector<8x1xf32> to vector<8x32xf32>
    %31 = arith.mulf %5, %30 : vector<8x32xf32>
    %cst_12 = arith.constant dense<0.000000e+00> : vector<8x8xf32>
    %32 = tpu.matmul %27, %29, %cst_12 {dimension_numbers = #tpu.dot_dimension_numbers<[1], [1], [0], [0], [0, 0, 1, 0], [], []>} : vector<8x32xf32>, vector<8x32xf32>, vector<8x8xf32> -> vector<8x8xf32>
    %33 = arith.mulf %27, %31 : vector<8x32xf32>
    %cst_13 = arith.constant dense<0.000000e+00> : vector<8xf32>
    %34 = vector.multi_reduction <add>, %33, %cst_13 [1] : vector<8x32xf32> to vector<8xf32>
    %35 = vector.shape_cast %34 : vector<8xf32> to vector<8x1xf32>
    %cst_14 = arith.constant 1.000000e+00 : f32
    %36 = vector.broadcast %cst_14 : f32 to vector<8x8xf32>
    %37 = arith.subf %32, %36 : vector<8x8xf32>
    %38 = math.exp %37 : vector<8x8xf32>
    %cst_15 = arith.constant dense<0.000000e+00> : vector<8xf32>
    %39 = vector.multi_reduction <add>, %38, %cst_15 [1] : vector<8x8xf32> to vector<8xf32>
    %40 = vector.shape_cast %39 : vector<8xf32> to vector<8x1xf32>
    %41 = math.log %40 : vector<8x1xf32>
    %cst_16 = arith.constant 1.000000e+00 : f32
    %42 = vector.broadcast %cst_16 : f32 to vector<8x1xf32>
    %43 = arith.addf %41, %42 : vector<8x1xf32>
    %c0_17 = arith.constant 0 : index
    %c0_18 = arith.constant 0 : index
    %44 = vector.load %arg6[%c0_17, %c0_18] : memref<8x1xf32, #tpu.memory_space<vmem>>, vector<8x1xf32>
    %45 = arith.addf %44, %43 : vector<8x1xf32>
    %c0_19 = arith.constant 0 : index
    %c0_20 = arith.constant 0 : index
    %46 = vector.load %arg6[%c0_19, %c0_20] : memref<8x1xf32, #tpu.memory_space<vmem>>, vector<8x1xf32>
    tpu.vector_store %arg6[%c0_19, %c0_20], %45 {strides = array<i32>} : memref<8x1xf32, #tpu.memory_space<vmem>>, vector<8x1xf32>,
    %c0_21 = arith.constant 0 : index
    %c0_22 = arith.constant 0 : index
    %47 = vector.load %arg7[%c0_21, %c0_22] : memref<8x1xf32, #tpu.memory_space<vmem>>, vector<8x1xf32>
    %48 = arith.addf %47, %35 : vector<8x1xf32>
    %c0_23 = arith.constant 0 : index
    %c0_24 = arith.constant 0 : index
    %49 = vector.load %arg7[%c0_23, %c0_24] : memref<8x1xf32, #tpu.memory_space<vmem>>, vector<8x1xf32>
    tpu.vector_store %arg7[%c0_23, %c0_24], %48 {strides = array<i32>} : memref<8x1xf32, #tpu.memory_space<vmem>>, vector<8x1xf32>,
    %c0_25 = arith.constant 0 : index
    %c0_26 = arith.constant 0 : index
    %50 = vector.load %arg5[%c0_25, %c0_26] : memref<1x8xf32, #tpu.memory_space<vmem>>, vector<1x8xf32>
    %cst_27 = arith.constant dense<0.000000e+00> : vector<8xf32>
    %51 = vector.multi_reduction <add>, %38, %cst_27 [0] : vector<8x8xf32> to vector<8xf32>
    %52 = vector.shape_cast %51 : vector<8xf32> to vector<1x8xf32>
    %53 = arith.addf %50, %52 : vector<1x8xf32>
    %c0_28 = arith.constant 0 : index
    %c0_29 = arith.constant 0 : index
    %54 = vector.load %arg5[%c0_28, %c0_29] : memref<1x8xf32, #tpu.memory_space<vmem>>, vector<1x8xf32>
    tpu.vector_store %arg5[%c0_28, %c0_29], %53 {strides = array<i32>} : memref<1x8xf32, #tpu.memory_space<vmem>>, vector<1x8xf32>,
    %c0_i32_30 = arith.constant 0 : i32
    %55 = arith.cmpi eq, %arg0, %c0_i32_30 : i32
    %56 = arith.extui %55 : i1 to i32
    %c0_i32_31 = arith.constant 0 : i32
    %57 = arith.cmpi ne, %56, %c0_i32_31 : i32
    scf.if %57 {
      %c0_32 = arith.constant 0 : index
      %c0_33 = arith.constant 0 : index
      %58 = vector.load %arg5[%c0_32, %c0_33] : memref<1x8xf32, #tpu.memory_space<vmem>>, vector<1x8xf32>
      %59 = math.log %58 : vector<1x8xf32>
      %cst_34 = arith.constant 1.000000e+00 : f32
      %60 = vector.broadcast %cst_34 : f32 to vector<1x8xf32>
      %61 = arith.addf %59, %60 : vector<1x8xf32>
      %c0_35 = arith.constant 0 : index
      %c0_36 = arith.constant 0 : index
      %62 = vector.load %arg7[%c0_35, %c0_36] : memref<8x1xf32, #tpu.memory_space<vmem>>, vector<8x1xf32>
      %63 = vector.shape_cast %62 : vector<8x1xf32> to vector<1x8x1xf32>
      %cst_37 = arith.constant dense<0.000000e+00> : vector<1xf32>
      %64 = vector.multi_reduction <add>, %63, %cst_37 [1, 2] : vector<1x8x1xf32> to vector<1xf32>
      %65 = vector.shape_cast %64 : vector<1xf32> to vector<1x1x1xf32>
      %66 = vector.extract %65[0, 0, 0] : f32 from vector<1x1x1xf32>
      %c0_38 = arith.constant 0 : index
      %c0_39 = arith.constant 0 : index
      %67 = vector.load %arg6[%c0_38, %c0_39] : memref<8x1xf32, #tpu.memory_space<vmem>>, vector<8x1xf32>
      %68 = vector.shape_cast %67 : vector<8x1xf32> to vector<1x8x1xf32>
      %cst_40 = arith.constant dense<0.000000e+00> : vector<1xf32>
      %69 = vector.multi_reduction <add>, %68, %cst_40 [1, 2] : vector<1x8x1xf32> to vector<1xf32>
      %70 = vector.shape_cast %69 : vector<1xf32> to vector<1x1x1xf32>
      %71 = vector.extract %70[0, 0, 0] : f32 from vector<1x1x1xf32>
      %72 = arith.subf %71, %66 : f32
      %cst_41 = arith.constant 8.000000e+00 : f32
      %73 = arith.divf %72, %cst_41 : f32
      %74 = vector.shape_cast %61 : vector<1x8xf32> to vector<1x1x8xf32>
      %cst_42 = arith.constant dense<0.000000e+00> : vector<1xf32>
      %75 = vector.multi_reduction <add>, %74, %cst_42 [1, 2] : vector<1x1x8xf32> to vector<1xf32>
      %76 = vector.shape_cast %75 : vector<1xf32> to vector<1x1x1xf32>
      %77 = vector.extract %76[0, 0, 0] : f32 from vector<1x1x1xf32>
      %78 = arith.subf %77, %66 : f32
      %cst_43 = arith.constant 8.000000e+00 : f32
      %79 = arith.divf %78, %cst_43 : f32
      %80 = arith.addf %73, %79 : f32
      %c0_44 = arith.constant 0 : index
      %c0_45 = arith.constant 0 : index
      %81 = memref.load %arg4[%c0_44, %c0_45] : memref<1x3xf32, #tpu.memory_space<smem>>
      memref.store %80, %arg4[%c0_44, %c0_45] : memref<1x3xf32, #tpu.memory_space<smem>>
      %c0_46 = arith.constant 0 : index
      %c1 = arith.constant 1 : index
      %82 = memref.load %arg4[%c0_46, %c1] : memref<1x3xf32, #tpu.memory_space<smem>>
      memref.store %73, %arg4[%c0_46, %c1] : memref<1x3xf32, #tpu.memory_space<smem>>
      %c0_47 = arith.constant 0 : index
      %c2 = arith.constant 2 : index
      %83 = memref.load %arg4[%c0_47, %c2] : memref<1x3xf32, #tpu.memory_space<smem>>
      memref.store %79, %arg4[%c0_47, %c2] : memref<1x3xf32, #tpu.memory_space<smem>>
    } else {
    }
    return
  }
  func.func @transform_0(%arg0: i32) -> (i32, i32) {
    %c0_i32 = arith.constant 0 : i32
    %c0_i32_0 = arith.constant 0 : i32
    return %arg0, %c0_i32 : i32, i32
  }
  func.func @transform_1(%arg0: i32) -> (i32, i32) {
    %c0_i32 = arith.constant 0 : i32
    %c0_i32_0 = arith.constant 0 : i32
    %c0_i32_1 = arith.constant 0 : i32
    return %c0_i32, %c0_i32_0 : i32, i32
  }
  func.func @transform_2(%arg0: i32) -> (i32, i32) {
    %c0_i32 = arith.constant 0 : i32
    %c0_i32_0 = arith.constant 0 : i32
    return %arg0, %c0_i32 : i32, i32
  }
  func.func @transform_3(%arg0: i32) -> (i32, i32) {
    %c0_i32 = arith.constant 0 : i32
    %c0_i32_0 = arith.constant 0 : i32
    %c0_i32_1 = arith.constant 0 : i32
    return %c0_i32, %c0_i32_0 : i32, i32
  }
}

</mosaic_0001>

<llo_original>
// kernel: tpu_custom_call.1
$region0: #{tpu_custom_call.1}
  #allocation0 [shape = 'u32[]', space=smem, size = 0x4, offset = 0x4, fixed_abs, tag = 'smem constant byte address 0x4 - core index']
  #allocation1 [shape = 'u32[72,128]{1,0:T(1,128)}', space=vmem, size = 0x9000, scoped, tag = 'internal scratch']
  #allocation2 [shape = 'f32[1,8]{1,0:T(1,128)}', space=vmem, size = 0x200, scoped, tag = 'scratch operand']
  #allocation3 [shape = 'f32[8,1]{1,0:T(8,128)}', space=vmem, size = 0x1000, scoped, tag = 'scratch operand']
  #allocation4 [shape = 'f32[8,1]{1,0:T(8,128)}', space=vmem, size = 0x1000, scoped, tag = 'scratch operand']
  %s0 = inlined_call_operand.hbm [shape: f32[8,32], index: 0, kind: input, shape index: {}]
  %s1 = inlined_call_operand.hbm [shape: f32[8,32], index: 1, kind: input, shape index: {}]
  %s2 = inlined_call_operand.hbm [shape: f32[8,32], index: 2, kind: input, shape index: {}]
  %s3 = inlined_call_operand.hbm [shape: f32[1,3], index: 3, kind: output, shape index: {}]
  %s4 = sld [smem:[#allocation0]]
  $region42: #{tpu_custom_call.1} parent=0
    _
  %s6 = ssub.s32 1, %s4
  %s7 = scalar_select 0, %s6, %s4
  $region1: #{tpu_custom_call.1} parent=0
    #allocation5 [shape = 'u8[4096]{0}', space=vmem, size = 0x1000, scoped, tag = 'input window, operand 0, single buffered']
    #allocation6 [shape = 's32[1]{0}', space=sflag, size = 0x4, scoped, tag = 'scoped memory for tpu_custom_call.1']
    #allocation7 [shape = 's32[1]{0}', space=sflag, size = 0x4, scoped, tag = 'scoped memory for tpu_custom_call.1']
    #allocation8 [shape = 'u8[4096]{0}', space=vmem, size = 0x1000, scoped, tag = 'input window, operand 1, single buffered']
    #allocation9 [shape = 's32[1]{0}', space=sflag, size = 0x4, scoped, tag = 'scoped memory for tpu_custom_call.1']
    #allocation10 [shape = 'u8[4096]{0}', space=vmem, size = 0x1000, scoped, tag = 'input window, operand 2, single buffered']
    #allocation11 [shape = 'u8[512]{0}', space=smem, size = 0x200, scoped, tag = 'output window, operand 0, single buffered']
    %8 = vsyncpa [#allocation6], 0
    %9 = vsyncpa [#allocation9], 0
    %10 = vsyncpa [#allocation7], 0
    // Predicated region
    $region2: #{tpu_custom_call.1} parent=1 // pred_check
      _
    $region3: #{tpu_custom_call.1} parent=1 // pred_check_branch
      %12 = sbr.rel (0) target = $region5
    $region4: #{tpu_custom_call.1} parent=1 // pred_region
      %14 = vsyncadd [#allocation6], 0
      %s16 = sshll.u32 %s0, 4
      %s17 = int_to_ptr.hbm [resolvable:$true] %s16
      %s18 = sshll.u32 [#allocation5], 4
      %s19 = int_to_ptr.vmem [resolvable:$true] %s18
      %21 = dma.hbm_to_vmem [thread:$0]  %s17, 128, %s19, [#allocation6]
    $region5: #{tpu_custom_call.1} parent=1 // pred_fallthru
      _
    // Predicated region
    $region6: #{tpu_custom_call.1} parent=1 // pred_check
      _
    $region7: #{tpu_custom_call.1} parent=1 // pred_check_branch
      %23 = sbr.rel (0) target = $region9
    $region8: #{tpu_custom_call.1} parent=1 // pred_region
      %25 = vsyncadd [#allocation9], 0
      %s27 = sshll.u32 %s1, 4
      %s28 = int_to_ptr.hbm [resolvable:$true] %s27
      %s29 = sshll.u32 [#allocation8], 4
      %s30 = int_to_ptr.vmem [resolvable:$true] %s29
      %32 = dma.hbm_to_vmem [thread:$0]  %s28, 128, %s30, [#allocation9]
    $region9: #{tpu_custom_call.1} parent=1 // pred_fallthru
      _
    // Predicated region
    $region10: #{tpu_custom_call.1} parent=1 // pred_check
      _
    $region11: #{tpu_custom_call.1} parent=1 // pred_check_branch
      %34 = sbr.rel (0) target = $region13
    $region12: #{tpu_custom_call.1} parent=1 // pred_region
      %36 = vsyncadd [#allocation9], 0
      %s38 = sshll.u32 %s2, 4
      %s39 = int_to_ptr.hbm [resolvable:$true] %s38
      %s40 = sshll.u32 [#allocation10], 4
      %s41 = int_to_ptr.vmem [resolvable:$true] %s40
      %43 = dma.hbm_to_vmem [thread:$0]  %s39, 128, %s41, [#allocation9]
    $region13: #{tpu_custom_call.1} parent=1 // pred_fallthru
      _
    // Predicated region
    $region14: #{tpu_custom_call.1} parent=1 // pred_check
      _
    $region15: #{tpu_custom_call.1} parent=1 // pred_check_branch
      %45 = sbr.rel (0) target = $region17
    $region16: #{tpu_custom_call.1} parent=1 // pred_region
      %47 = dma.done [#allocation6], 128
    $region17: #{tpu_custom_call.1} parent=1 // pred_fallthru
      _
    // Predicated region
    $region18: #{tpu_custom_call.1} parent=1 // pred_check
      _
    $region19: #{tpu_custom_call.1} parent=1 // pred_check_branch
      %49 = sbr.rel (0) target = $region21
    $region20: #{tpu_custom_call.1} parent=1 // pred_region
      %51 = dma.done [#allocation9], 128
    $region21: #{tpu_custom_call.1} parent=1 // pred_fallthru
      _
    // Predicated region
    $region22: #{tpu_custom_call.1} parent=1 // pred_check
      _
    $region23: #{tpu_custom_call.1} parent=1 // pred_check_branch
      %53 = sbr.rel (0) target = $region25
    $region24: #{tpu_custom_call.1} parent=1 // pred_region
      %55 = dma.done [#allocation9], 128
    $region25: #{tpu_custom_call.1} parent=1 // pred_fallthru
      _
    %p56 = scmp.eq.s32.totalorder 0, 0
    // Predicated region
    $region26: #{tpu_custom_call.1} parent=1 // pred_check
      %p57 = pneg %p56
    $region27: #{tpu_custom_call.1} parent=1 // pred_check_branch
      %59 = sbr.rel (%p57) target = $region29
    $region28: #{tpu_custom_call.1} parent=1 // pred_region
      %vm60 = vcmask 57344
      %61 = vst.msk [vmem:[#allocation2] sm:$0x1] %vm60, 0.0
      %vm62 = vcmask 7168
      %63 = vst.msk [vmem:[#allocation3] sm:$0xff] %vm62, 0.0
      %64 = vst.msk [vmem:[#allocation4] sm:$0xff] %vm62, 0.0
    $region29: #{tpu_custom_call.1} parent=1 // pred_fallthru
      _
    %v65 = vld [vmem:[#allocation5] sm:$0xff]
    %v66 = vld [vmem:[#allocation8] sm:$0xff]
    %v67 = vld [vmem:[#allocation10] sm:$0xff]
    %v68 = vmul.f32 %v65, %v65
    %vm69 = vcmask 261120
    %v70 = vsel %vm69, %v68, 0.0
    %71 = vadd.xlane.f32.xlu0 %v70
    %v72 = vpop.xlane.xlu0 %71
    %v73 = vmax.f32 %v72, 1e-16
    %v74 = vrsqrt.pop %v73
    %v75 = vmul.f32 %v74, %v73
    %v76 = vmul.f32 %v75, %v74
    %v77 = vmul.f32 0.5, %v76
    %v78 = vsub.f32 1.5, %v77
    %v79 = vmul.f32 %v74, %v78
    %vm80 = vweird.f32 %v73
    %vm81 = vweird.f32 %v74
    %vm82 = vmor %vm80, %vm81
    %v83 = vsel %vm82, %v74, %v79
    %v84 = vmul.f32 %v66, %v66
    %v85 = vsel %vm69, %v84, 0.0
    %86 = vadd.xlane.f32.xlu0 %v85
    %v87 = vpop.xlane.xlu0 %86
    %v88 = vmax.f32 %v87, 1e-16
    %v89 = vrsqrt.pop %v88
    %v90 = vmul.f32 %v89, %v88
    %v91 = vmul.f32 %v90, %v89
    %v92 = vmul.f32 0.5, %v91
    %v93 = vsub.f32 1.5, %v92
    %v94 = vmul.f32 %v89, %v93
    %vm95 = vweird.f32 %v88
    %vm96 = vweird.f32 %v89
    %vm97 = vmor %vm95, %vm96
    %v98 = vsel %vm97, %v89, %v94
    %v99 = vmul.f32 %v67, %v67
    %v100 = vsel %vm69, %v99, 0.0
    %101 = vadd.xlane.f32.xlu0 %v100
    %v102 = vpop.xlane.xlu0 %101
    %v103 = vmax.f32 %v102, 1e-16
    %v104 = vrsqrt.pop %v103
    %v105 = vmul.f32 %v104, %v103
    %v106 = vmul.f32 %v105, %v104
    %v107 = vmul.f32 0.5, %v106
    %v108 = vsub.f32 1.5, %v107
    %v109 = vmul.f32 %v104, %v108
    %vm110 = vweird.f32 %v103
    %vm111 = vweird.f32 %v104
    %vm112 = vmor %vm110, %vm111
    %v113 = vsel %vm112, %v104, %v109
    %v114 = vmul.f32 %v65, %v83
    %v115 = vmul.f32 %v66, %v98
    %v116 = vmul.f32 %v67, %v113
    %v118 = vsel %vm69, %v114, 0
    %v121 = vsel %vm69, %v115, 0
    %123 = vmatpush.xpose.msra.mxu0 0.0
    %124 = vmatpush.xpose.msra.mxu0 0.0
    %125 = vmatpush.xpose.msra.mxu0 0.0
    %126 = vmatpush.xpose.msra.mxu0 0.0
    %127 = vmatpush.xpose.msra.mxu0 0.0
    %128 = vmatpush.xpose.msra.mxu0 0.0
    %129 = vmatpush.xpose.msra.mxu0 0.0
    %130 = vmatpush.xpose.msra.mxu0 0.0
    %131 = vmatpush.xpose.msra.mxu0 0.0
    %132 = vmatpush.xpose.msra.mxu0 0.0
    %133 = vmatpush.xpose.msra.mxu0 0.0
    %134 = vmatpush.xpose.msra.mxu0 0.0
    %135 = vmatpush.xpose.msra.mxu0 0.0
    %136 = vmatpush.xpose.msra.mxu0 0.0
    %137 = vmatpush.xpose.msra.mxu0 0.0
    %138 = vmatpush.xpose.msra.mxu0 %v121
    %139 = vmatmul.f32.gmra.mxu0 %v118
    %v140 = vpop.f32.mrf.mxu0
    %v141 = vadd.f32 0.0, %v140
    %142 = vdwg.mxu0
    %v143 = vmul.f32 %v114, %v116
    %v144 = vsel %vm69, %v143, 0.0
    %145 = vadd.xlane.f32.xlu0 %v144
    %v146 = vpop.xlane.xlu0 %145
    %v147 = vsub.f32 %v141, 1.0
    %v148 = vmul.f32 %v147, 1.442695
    %v149 = vpow.pop %v148
    %vm150 = vcmask 64512
    %v151 = vsel %vm150, %v149, 0.0
    %152 = vadd.xlane.f32.xlu0 %v151
    %v153 = vpop.xlane.xlu0 %152
    %v154 = vlog2.pop %v153
    %v155 = vmul.f32 %v154, 0.6931472
    %v156 = vadd.f32 %v155, 1.0
    %v157 = vld [vmem:[#allocation3] sm:$0xff]
    %v158 = vadd.f32 %v157, %v156
    %vm159 = vcmask 7168
    %160 = vst.msk [vmem:[#allocation3] sm:$0xff] %vm159, %v158
    %v161 = vld [vmem:[#allocation4] sm:$0xff]
    %v162 = vadd.f32 %v161, %v146
    %163 = vst.msk [vmem:[#allocation4] sm:$0xff] %vm159, %v162
    %v164 = vld [vmem:[#allocation2] sm:$0x1]
    %v165 = vrot.slane %v151, 4
    %v166 = vadd.f32 %v151, %v165
    %v167 = vrot.slane %v166, 2
    %v168 = vadd.f32 %v166, %v167
    %v169 = vrot.slane %v168, 1
    %v170 = vadd.f32 %v168, %v169
    %v171 = vadd.f32 %v164, %v170
    %vm172 = vcmask 57344
    %173 = vst.msk [vmem:[#allocation2] sm:$0x1] %vm172, %v171
    // Predicated region
    $region30: #{tpu_custom_call.1} parent=1 // pred_check
      %p174 = pneg %p56
    $region31: #{tpu_custom_call.1} parent=1 // pred_check_branch
      %176 = sbr.rel (%p174) target = $region33
    $region32: #{tpu_custom_call.1} parent=1 // pred_region
      %v177 = vld [vmem:[#allocation2] sm:$0x1]
      %v178 = vlog2.pop %v177
      %v179 = vmul.f32 %v178, 0.6931472
      %v180 = vadd.f32 %v179, 1.0
      %v181 = vld [vmem:[#allocation4] sm:$0xff]
      %v182 = vsel %vm159, %v181, 0.0
      %183 = vadd.xlane.f32.xlu0 %v182
      %v184 = vpop.xlane.xlu0 %183
      %v185 = vrot.slane %v184, 4
      %v186 = vadd.f32 %v184, %v185
      %v187 = vrot.slane %v186, 2
      %v188 = vadd.f32 %v186, %v187
      %v189 = vrot.slane %v188, 1
      %v190 = vadd.f32 %v188, %v189
      %s191 = vtos %v190
      %v192 = vld [vmem:[#allocation3] sm:$0xff]
      %v193 = vsel %vm159, %v192, 0.0
      %194 = vadd.xlane.f32.xlu0 %v193
      %v195 = vpop.xlane.xlu0 %194
      %v196 = vrot.slane %v195, 4
      %v197 = vadd.f32 %v195, %v196
      %v198 = vrot.slane %v197, 2
      %v199 = vadd.f32 %v197, %v198
      %v200 = vrot.slane %v199, 1
      %v201 = vadd.f32 %v199, %v200
      %s202 = vtos %v201
      %s203 = ssub.f32 %s202, %s191
      %v204 = vrcp.pop 8.0
      %v205 = vmul.f32 8.0, %v204
      %v206 = vsub.f32 1.0, %v205
      %v207 = vmul.f32 %v204, %v206
      %v208 = vadd.f32 %v204, %v207
      %vm209 = vweird.f32 %v204
      %v210 = vsel %vm209, %v204, %v208
      %s211 = vtos %v210
      %s212 = smul.f32 %s203, %s211
      %v213 = vsel %vm172, %v180, 0.0
      %214 = vadd.xlane.f32.xlu0 %v213
      %v215 = vpop.xlane.xlu0 %214
      %v216 = vrot.slane %v215, 4
      %v217 = vadd.f32 %v215, %v216
      %v218 = vrot.slane %v217, 2
      %v219 = vadd.f32 %v217, %v218
      %v220 = vrot.slane %v219, 1
      %v221 = vadd.f32 %v219, %v220
      %s222 = vtos %v221
      %s223 = ssub.f32 %s222, %s191
      %v224 = vrcp.pop 8.0
      %v225 = vmul.f32 8.0, %v224
      %v226 = vsub.f32 1.0, %v225
      %v227 = vmul.f32 %v224, %v226
      %v228 = vadd.f32 %v224, %v227
      %vm229 = vweird.f32 %v224
      %v230 = vsel %vm229, %v224, %v228
      %s231 = vtos %v230
      %s232 = smul.f32 %s223, %s231
      %s233 = sadd.f32 %s212, %s232
      %s234 = scalar_lea.smem [#allocation11], 0
      %235 = sst [smem:[%s234]] %s233
      %s236 = scalar_lea.smem [#allocation11], 1
      %237 = sst [smem:[%s236]] %s212
      %s238 = scalar_lea.smem [#allocation11], 2
      %239 = sst [smem:[%s238]] %s232
    $region33: #{tpu_custom_call.1} parent=1 // pred_fallthru
      _
    // Predicated region
    $region34: #{tpu_custom_call.1} parent=1 // pred_check
      _
    $region35: #{tpu_custom_call.1} parent=1 // pred_check_branch
      %241 = sbr.rel (0) target = $region37
    $region36: #{tpu_custom_call.1} parent=1 // pred_region
      %243 = vsyncadd [#allocation7], 0
      %s245 = sshll.u32 %s3, 4
      %s246 = int_to_ptr.hbm [resolvable:$true] %s245
      %248 = dma.smem_to_hbm [#allocation11], 16, %s246, [#allocation7]
    $region37: #{tpu_custom_call.1} parent=1 // pred_fallthru
      _
    // Predicated region
    $region38: #{tpu_custom_call.1} parent=1 // pred_check
      _
    $region39: #{tpu_custom_call.1} parent=1 // pred_check_branch
      %250 = sbr.rel (0) target = $region41
    $region40: #{tpu_custom_call.1} parent=1 // pred_region
      %252 = dma.done [#allocation7], 16
    $region41: #{tpu_custom_call.1} parent=1 // pred_fallthru
      _
    %253 = sfence
    %254 = vsyncpa [#allocation6], 1
    %255 = vsyncpa [#allocation9], 1
    %256 = vsyncpa [#allocation7], 1

</llo_original>
